<compile_context>
chip_gen: v7x
topology: tpu7x:2x2x1
jax: 0.10.0
libtpu: 0.0.40
codegen_flags: <defaults>
</compile_context>

<pallas_src>
import functools

import jax
import jax.numpy as jnp
from jax import lax
from jax.experimental import pallas as pl
from jax.experimental.pallas import tpu as pltpu


def _l2_normalize_rows(y):
    # Matches F.normalize(p=2, dim=1, eps=1e-12):  y / max(||y||, 1e-12)
    sq = jnp.sum(y * y, axis=1, keepdims=True)
    return y * lax.rsqrt(jnp.maximum(sq, 1e-24))


def _sje_kernel(x_img_ref, w_img_ref, b_img_ref,
                x_txt_ref, w_txt_ref, b_txt_ref,
                o_img_ref, o_txt_ref, acc_ref,
                *, normalize_img: bool, normalize_txt: bool):
    k = pl.program_id(1)
    nk = pl.num_programs(1)

    # ---- init: image accumulator starts from the bias (added once) -------
    @pl.when(k == 0)
    def _():
        acc_ref[...] = jnp.broadcast_to(
            b_img_ref[...].astype(jnp.float32), acc_ref.shape)

    # ---- image projection: K-tiled bf16 matmul, f32 accumulation ---------
    acc_ref[...] += jnp.dot(x_img_ref[...], w_img_ref[...],
                            preferred_element_type=jnp.float32)

    # ---- finalize: txt projection + both writebacks at the last k step ---
    @pl.when(k == nk - 1)
    def _():
        # txt encoder (single small matmul; operands are grid-resident)
        y_txt = jnp.dot(x_txt_ref[...], w_txt_ref[...],
                        preferred_element_type=jnp.float32)
        y_txt = y_txt + b_txt_ref[...].astype(jnp.float32)
        if normalize_txt:
            y_txt = _l2_normalize_rows(y_txt)
        o_txt_ref[...] = y_txt.astype(o_txt_ref.dtype)

        y_img = acc_ref[...]
        if normalize_img:
            y_img = _l2_normalize_rows(y_img)
        o_img_ref[...] = y_img.astype(o_img_ref.dtype)


def sje_forward(images, descriptions, params,
                normalize_img: bool = False, normalize_txt: bool = False):
    """Fused SJE forward.  images: [B,C,H,W], descriptions: [B, Din_txt]."""
    B = images.shape[0]
    x_img = images.reshape(B, -1)
    din_img = x_img.shape[1]
    x_txt = descriptions
    din_txt = x_txt.shape[1]
    D = params["w_img"].shape[1]

    # bf16 operands for the MXU; biases stay f32 (added into the f32 acc).
    x_img = x_img.astype(jnp.bfloat16)
    w_img = params["w_img"].astype(jnp.bfloat16)
    x_txt = x_txt.astype(jnp.bfloat16)
    w_txt = params["w_txt"].astype(jnp.bfloat16)
    b_img = params["b_img"].reshape(1, D).astype(jnp.float32)
    b_txt = params["b_txt"].reshape(1, D).astype(jnp.float32)

    # K tiling of the dominant (image) projection.  TK multiple of 128 so the
    # x lane dim and the w sublane dim stay aligned; sized well under the
    # v7x 32 MiB scoped-VMEM default even with double-buffering.
    TK = din_img if din_img <= 512 else 512
    if din_img % TK:
        pad = TK - din_img % TK
        x_img = jnp.pad(x_img, ((0, 0), (0, pad)))
        w_img = jnp.pad(w_img, ((0, pad), (0, 0)))
    nk = x_img.shape[1] // TK

    # M tiling: trivial (1 tile) for small batches, 256-row tiles when the
    # batch fills the MXU; M axis is "parallel" for megacore sharding.
    TM = 256 if (B >= 256 and B % 256 == 0) else B
    nm = B // TM

    kernel = functools.partial(_sje_kernel,
                               normalize_img=normalize_img,
                               normalize_txt=normalize_txt)

    fea_img, fea_txt = pl.pallas_call(
        kernel,
        out_shape=(jax.ShapeDtypeStruct((B, D), jnp.float32),
                   jax.ShapeDtypeStruct((B, D), jnp.float32)),
        grid_spec=pltpu.PrefetchScalarGridSpec(
            num_scalar_prefetch=0,
            grid=(nm, nk),
            in_specs=[
                pl.BlockSpec((TM, TK), lambda m, k: (m, k)),        # x_img
                pl.BlockSpec((TK, D), lambda m, k: (k, 0)),         # w_img
                pl.BlockSpec((1, D), lambda m, k: (0, 0)),          # b_img
                pl.BlockSpec((TM, din_txt), lambda m, k: (m, 0)),   # x_txt
                pl.BlockSpec((din_txt, D), lambda m, k: (0, 0)),    # w_txt
                pl.BlockSpec((1, D), lambda m, k: (0, 0)),          # b_txt
            ],
            out_specs=[
                pl.BlockSpec((TM, D), lambda m, k: (m, 0)),         # fea_img
                pl.BlockSpec((TM, D), lambda m, k: (m, 0)),         # fea_txt
            ],
            scratch_shapes=[pltpu.VMEM((TM, D), jnp.float32)],
        ),
        compiler_params=pltpu.CompilerParams(
            dimension_semantics=("parallel", "arbitrary")),
    )(x_img, w_img, b_img, x_txt, w_txt, b_txt)

    return fea_img, fea_txt


if __name__ == "__main__":
    # Small, deterministic shapes consistent with the module.
    B = 2                 # batch
    C, H, W = 4, 16, 16   # image NCHW  -> flattened Din = 1024
    TXT_DIM = 256         # description feature dim
    EMB_DIM = 128         # joint embedding dim

    key = jax.random.PRNGKey(0)
    k_img, k_txt, k_wimg, k_bimg, k_wtxt, k_btxt = jax.random.split(key, 6)

    images = jax.random.normal(k_img, (B, C, H, W), dtype=jnp.float32)
    descriptions = jax.random.normal(k_txt, (B, TXT_DIM), dtype=jnp.float32)

    img_in = C * H * W
    params = {
        "w_img": jax.random.normal(k_wimg, (img_in, EMB_DIM), jnp.float32)
                 * (1.0 / jnp.sqrt(img_in)),
        "b_img": jax.random.normal(k_bimg, (EMB_DIM,), jnp.float32) * 0.01,
        "w_txt": jax.random.normal(k_wtxt, (TXT_DIM, EMB_DIM), jnp.float32)
                 * (1.0 / jnp.sqrt(TXT_DIM)),
        "b_txt": jax.random.normal(k_btxt, (EMB_DIM,), jnp.float32) * 0.01,
    }

    fea_img, fea_txt = sje_forward(
        images, descriptions, params, normalize_img=True, normalize_txt=True)
    jax.block_until_ready((fea_img, fea_txt))

    # Reference in plain JAX with the same bf16 rounding of x/W (f32 accum).
    def _ref_encode(x, w, b, normalize):
        xb = x.astype(jnp.bfloat16).astype(jnp.float32)
        wb = w.astype(jnp.bfloat16).astype(jnp.float32)
        y = xb @ wb + b
        if normalize:
            n = jnp.sqrt(jnp.sum(y * y, axis=1, keepdims=True))
            y = y / jnp.maximum(n, 1e-12)
        return y

    ref_img = _ref_encode(images.reshape(B, -1), params["w_img"],
                          params["b_img"], True)
    ref_txt = _ref_encode(descriptions, params["w_txt"],
                          params["b_txt"], True)

    assert fea_img.shape == (B, EMB_DIM) and fea_txt.shape == (B, EMB_DIM)
    assert jnp.allclose(fea_img, ref_img, atol=1e-3, rtol=1e-3)
    assert jnp.allclose(fea_txt, ref_txt, atol=1e-3, rtol=1e-3)

    print("KERNEL_OK")
</pallas_src>

<mosaic_0001>
module attributes {stable_mosaic.version = 11 : i64} {
  func.func @_sje_kernel(%arg0: i32, %arg1: i32, %arg2: memref<2x512xbf16, #tpu.memory_space<vmem>>, %arg3: memref<512x128xbf16, #tpu.memory_space<vmem>>, %arg4: memref<1x128xf32, #tpu.memory_space<vmem>>, %arg5: memref<2x256xbf16, #tpu.memory_space<vmem>>, %arg6: memref<256x128xbf16, #tpu.memory_space<vmem>>, %arg7: memref<1x128xf32, #tpu.memory_space<vmem>>, %arg8: memref<2x128xf32, #tpu.memory_space<vmem>>, %arg9: memref<2x128xf32, #tpu.memory_space<vmem>>, %arg10: memref<2x128xf32, #tpu.memory_space<vmem>>) attributes {dimension_semantics = [#tpu.dimension_semantics<parallel>, #tpu.dimension_semantics<arbitrary>], iteration_bounds = array<i64: 1, 2>, scalar_prefetch = 0 : i64, scratch_operands = 1 : i64, tpu.core_type = #tpu.core_type<tc>, window_params = [{transform_indices = @transform_0, window_bounds = array<i64: 2, 512>}, {transform_indices = @transform_1, window_bounds = array<i64: 512, 128>}, {pipeline_mode = #tpu.pipeline_mode<synchronous>, transform_indices = @transform_2, window_bounds = array<i64: 1, 128>}, {transform_indices = @transform_3, window_bounds = array<i64: 2, 256>}, {pipeline_mode = #tpu.pipeline_mode<synchronous>, transform_indices = @transform_4, window_bounds = array<i64: 256, 128>}, {pipeline_mode = #tpu.pipeline_mode<synchronous>, transform_indices = @transform_5, window_bounds = array<i64: 1, 128>}, {transform_indices = @transform_6, window_bounds = array<i64: 2, 128>}, {transform_indices = @transform_7, window_bounds = array<i64: 2, 128>}]} {
    %c0_i32 = arith.constant 0 : i32
    %0 = arith.cmpi eq, %arg1, %c0_i32 : i32
    %1 = arith.extui %0 : i1 to i32
    %c0_i32_0 = arith.constant 0 : i32
    %2 = arith.cmpi ne, %1, %c0_i32_0 : i32
    scf.if %2 {
      %c0_9 = arith.constant 0 : index
      %c0_10 = arith.constant 0 : index
      %12 = vector.load %arg4[%c0_9, %c0_10] : memref<1x128xf32, #tpu.memory_space<vmem>>, vector<1x128xf32>
      %13 = vector.shape_cast %12 : vector<1x128xf32> to vector<1x128xf32>
      %14 = vector.broadcast %13 : vector<1x128xf32> to vector<2x128xf32>
      %c0_11 = arith.constant 0 : index
      %c0_12 = arith.constant 0 : index
      %15 = vector.load %arg10[%c0_11, %c0_12] : memref<2x128xf32, #tpu.memory_space<vmem>>, vector<2x128xf32>
      tpu.vector_store %arg10[%c0_11, %c0_12], %14 {strides = array<i32>} : memref<2x128xf32, #tpu.memory_space<vmem>>, vector<2x128xf32>,
    } else {
    }
    %c0 = arith.constant 0 : index
    %c0_1 = arith.constant 0 : index
    %3 = vector.load %arg10[%c0, %c0_1] : memref<2x128xf32, #tpu.memory_space<vmem>>, vector<2x128xf32>
    %c0_2 = arith.constant 0 : index
    %c0_3 = arith.constant 0 : index
    %4 = vector.load %arg2[%c0_2, %c0_3] : memref<2x512xbf16, #tpu.memory_space<vmem>>, vector<2x512xbf16>
    %c0_4 = arith.constant 0 : index
    %c0_5 = arith.constant 0 : index
    %5 = vector.load %arg3[%c0_4, %c0_5] : memref<512x128xbf16, #tpu.memory_space<vmem>>, vector<512x128xbf16>
    %cst = arith.constant dense<0.000000e+00> : vector<2x128xf32>
    %6 = tpu.matmul %4, %5, %cst {dimension_numbers = #tpu.dot_dimension_numbers<[1], [0], [0], [1], [0, 0, 1, 1], [], []>} : vector<2x512xbf16>, vector<512x128xbf16>, vector<2x128xf32> -> vector<2x128xf32>
    %7 = arith.addf %3, %6 : vector<2x128xf32>
    %c0_6 = arith.constant 0 : index
    %c0_7 = arith.constant 0 : index
    %8 = vector.load %arg10[%c0_6, %c0_7] : memref<2x128xf32, #tpu.memory_space<vmem>>, vector<2x128xf32>
    tpu.vector_store %arg10[%c0_6, %c0_7], %7 {strides = array<i32>} : memref<2x128xf32, #tpu.memory_space<vmem>>, vector<2x128xf32>,
    %c1_i32 = arith.constant 1 : i32
    %9 = arith.cmpi eq, %arg1, %c1_i32 : i32
    %10 = arith.extui %9 : i1 to i32
    %c0_i32_8 = arith.constant 0 : i32
    %11 = arith.cmpi ne, %10, %c0_i32_8 : i32
    scf.if %11 {
      %c0_9 = arith.constant 0 : index
      %c0_10 = arith.constant 0 : index
      %12 = vector.load %arg5[%c0_9, %c0_10] : memref<2x256xbf16, #tpu.memory_space<vmem>>, vector<2x256xbf16>
      %c0_11 = arith.constant 0 : index
      %c0_12 = arith.constant 0 : index
      %13 = vector.load %arg6[%c0_11, %c0_12] : memref<256x128xbf16, #tpu.memory_space<vmem>>, vector<256x128xbf16>
      %cst_13 = arith.constant dense<0.000000e+00> : vector<2x128xf32>
      %14 = tpu.matmul %12, %13, %cst_13 {dimension_numbers = #tpu.dot_dimension_numbers<[1], [0], [0], [1], [0, 0, 1, 1], [], []>} : vector<2x256xbf16>, vector<256x128xbf16>, vector<2x128xf32> -> vector<2x128xf32>
      %c0_14 = arith.constant 0 : index
      %c0_15 = arith.constant 0 : index
      %15 = vector.load %arg7[%c0_14, %c0_15] : memref<1x128xf32, #tpu.memory_space<vmem>>, vector<1x128xf32>
      %16 = vector.broadcast %15 : vector<1x128xf32> to vector<2x128xf32>
      %17 = arith.addf %14, %16 : vector<2x128xf32>
      %18 = arith.mulf %17, %17 : vector<2x128xf32>
      %cst_16 = arith.constant dense<0.000000e+00> : vector<2xf32>
      %19 = vector.multi_reduction <add>, %18, %cst_16 [1] : vector<2x128xf32> to vector<2xf32>
      %20 = vector.shape_cast %19 : vector<2xf32> to vector<2x1xf32>
      %cst_17 = arith.constant 1.000000e-24 : f32
      %21 = vector.broadcast %cst_17 : f32 to vector<2x1xf32>
      %22 = arith.maximumf %20, %21 : vector<2x1xf32>
      %23 = math.rsqrt %22 : vector<2x1xf32>
      %24 = vector.broadcast %23 : vector<2x1xf32> to vector<2x128xf32>
      %25 = arith.mulf %17, %24 : vector<2x128xf32>
      %c0_18 = arith.constant 0 : index
      %c0_19 = arith.constant 0 : index
      %26 = vector.load %arg9[%c0_18, %c0_19] : memref<2x128xf32, #tpu.memory_space<vmem>>, vector<2x128xf32>
      tpu.vector_store %arg9[%c0_18, %c0_19], %25 {strides = array<i32>} : memref<2x128xf32, #tpu.memory_space<vmem>>, vector<2x128xf32>,
      %c0_20 = arith.constant 0 : index
      %c0_21 = arith.constant 0 : index
      %27 = vector.load %arg10[%c0_20, %c0_21] : memref<2x128xf32, #tpu.memory_space<vmem>>, vector<2x128xf32>
      %28 = arith.mulf %27, %27 : vector<2x128xf32>
      %cst_22 = arith.constant dense<0.000000e+00> : vector<2xf32>
      %29 = vector.multi_reduction <add>, %28, %cst_22 [1] : vector<2x128xf32> to vector<2xf32>
      %30 = vector.shape_cast %29 : vector<2xf32> to vector<2x1xf32>
      %cst_23 = arith.constant 1.000000e-24 : f32
      %31 = vector.broadcast %cst_23 : f32 to vector<2x1xf32>
      %32 = arith.maximumf %30, %31 : vector<2x1xf32>
      %33 = math.rsqrt %32 : vector<2x1xf32>
      %34 = vector.broadcast %33 : vector<2x1xf32> to vector<2x128xf32>
      %35 = arith.mulf %27, %34 : vector<2x128xf32>
      %c0_24 = arith.constant 0 : index
      %c0_25 = arith.constant 0 : index
      %36 = vector.load %arg8[%c0_24, %c0_25] : memref<2x128xf32, #tpu.memory_space<vmem>>, vector<2x128xf32>
      tpu.vector_store %arg8[%c0_24, %c0_25], %35 {strides = array<i32>} : memref<2x128xf32, #tpu.memory_space<vmem>>, vector<2x128xf32>,
    } else {
    }
    return
  }
  func.func @transform_0(%arg0: i32, %arg1: i32) -> (i32, i32) {
    %c0_i32 = arith.constant 0 : i32
    return %arg0, %arg1 : i32, i32
  }
  func.func @transform_1(%arg0: i32, %arg1: i32) -> (i32, i32) {
    %c0_i32 = arith.constant 0 : i32
    %c0_i32_0 = arith.constant 0 : i32
    return %arg1, %c0_i32 : i32, i32
  }
  func.func @transform_2(%arg0: i32, %arg1: i32) -> (i32, i32) {
    %c0_i32 = arith.constant 0 : i32
    %c0_i32_0 = arith.constant 0 : i32
    %c0_i32_1 = arith.constant 0 : i32
    return %c0_i32, %c0_i32_0 : i32, i32
  }
  func.func @transform_3(%arg0: i32, %arg1: i32) -> (i32, i32) {
    %c0_i32 = arith.constant 0 : i32
    %c0_i32_0 = arith.constant 0 : i32
    return %arg0, %c0_i32 : i32, i32
  }
  func.func @transform_4(%arg0: i32, %arg1: i32) -> (i32, i32) {
    %c0_i32 = arith.constant 0 : i32
    %c0_i32_0 = arith.constant 0 : i32
    %c0_i32_1 = arith.constant 0 : i32
    return %c0_i32, %c0_i32_0 : i32, i32
  }
  func.func @transform_5(%arg0: i32, %arg1: i32) -> (i32, i32) {
    %c0_i32 = arith.constant 0 : i32
    %c0_i32_0 = arith.constant 0 : i32
    %c0_i32_1 = arith.constant 0 : i32
    return %c0_i32, %c0_i32_0 : i32, i32
  }
  func.func @transform_6(%arg0: i32, %arg1: i32) -> (i32, i32) {
    %c0_i32 = arith.constant 0 : i32
    %c0_i32_0 = arith.constant 0 : i32
    return %arg0, %c0_i32 : i32, i32
  }
  func.func @transform_7(%arg0: i32, %arg1: i32) -> (i32, i32) {
    %c0_i32 = arith.constant 0 : i32
    %c0_i32_0 = arith.constant 0 : i32
    return %arg0, %c0_i32 : i32, i32
  }
}

</mosaic_0001>

<llo_original>
// kernel: tpu_custom_call.1
$region0: #{tpu_custom_call.1}
  #allocation0 [shape = 'u32[]', space=smem, size = 0x4, offset = 0x4, fixed_abs, tag = 'smem constant byte address 0x4 - core index']
  #allocation1 [shape = 'u32[144,128]{1,0:T(1,128)}', space=vmem, size = 0x12000, scoped, tag = 'internal scratch']
  #allocation2 [shape = 'f32[2,128]{1,0:T(2,128)}', space=vmem, size = 0x400, scoped, tag = 'scratch operand']
  %s0 = inlined_call_operand.hbm [shape: bf16[2,1024], index: 0, kind: input, shape index: {}]
  %s1 = inlined_call_operand.hbm [shape: bf16[1024,128], index: 1, kind: input, shape index: {}]
  %s2 = inlined_call_operand.vmem [shape: f32[1,128], index: 2, kind: input, shape index: {}]
  %s3 = inlined_call_operand.vmem [shape: bf16[2,256], index: 3, kind: input, shape index: {}]
  %s4 = inlined_call_operand.hbm [shape: bf16[256,128], index: 4, kind: input, shape index: {}]
  %s5 = inlined_call_operand.vmem [shape: f32[1,128], index: 5, kind: input, shape index: {}]
  %s6 = inlined_call_operand.hbm [shape: f32[2,128], index: 6, kind: output, shape index: {0}]
  %s7 = inlined_call_operand.hbm [shape: f32[2,128], index: 7, kind: output, shape index: {1}]
  %8 = xla_tuple %s6, %s7
  %s9 = sld [smem:[#allocation0]]
  $region85: #{tpu_custom_call.1} parent=0
    _
  %s11 = ssub.s32 1, %s9
  %s12 = scalar_select 0, %s11, %s9
  $region1: #{tpu_custom_call.1} parent=0
    #allocation3 [shape = 'u8[4096]{0}', space=vmem, size = 0x1000, scoped, tag = 'input window, operand 0']
    #allocation4 [shape = 's32[2]{0}', space=sflag, size = 0x8, scoped, tag = 'scoped memory for tpu_custom_call.1']
    #allocation5 [shape = 's32[2]{0}', space=sflag, size = 0x8, scoped, tag = 'scoped memory for tpu_custom_call.1']
    #allocation6 [shape = 'u8[262144]{0}', space=vmem, size = 0x40000, scoped, tag = 'input window, operand 1']
    #allocation7 [shape = 's32[2]{0}', space=sflag, size = 0x8, scoped, tag = 'scoped memory for tpu_custom_call.1']
    #allocation8 [shape = 'u8[65536]{0}', space=vmem, size = 0x10000, scoped, tag = 'input window, operand 4, single buffered']
    #allocation9 [shape = 'u8[1024]{0}', space=vmem, size = 0x400, scoped, tag = 'output window, operand 0, single buffered']
    #allocation10 [shape = 'u8[1024]{0}', space=vmem, size = 0x400, scoped, tag = 'output window, operand 1, single buffered']
    #allocation11 [shape = 's32[1]{0}', space=sflag, size = 0x4, scoped, tag = 'scoped memory for tpu_custom_call.1']
    %13 = vsyncpa [#allocation4], 0
    %s14 = scalar_lea.sflag [#allocation4], 1
    %15 = vsyncpa %s14, 0
    %16 = vsyncpa [#allocation7], 0
    %s17 = scalar_lea.sflag [#allocation7], 1
    %18 = vsyncpa %s17, 0
    %19 = vsyncpa [#allocation5], 0
    %20 = vsyncpa [#allocation11], 0
    loop: start=0, step=1, limit=4
    $region2: #{tpu_custom_call.1} parent=1 // loop_pre_header
      _
    $region3: #{tpu_custom_call.1} parent=1 // loop_header
      %s22 = sphi 0, %s26
      %p23 = scmp.ge.s32.totalorder %s22, 4
      %s29 = sphi 0, %s41
      %s30 = sphi 0, %s37
      %s31 = sphi 0, %s29
      %s32 = sphi 0, %s30
      %s33 = sphi 0, %s31
      %s34 = sphi 0, %s32
      %s46 = sphi 0, %s48
      %s49 = sphi 0, %s46
      %s50 = sphi 0, %s49
      %s66 = sphi 0, %s50
      %s72 = sphi 0, %s74
      %s75 = sphi 0, %s72
      %s76 = sphi 0, %s75
      %s92 = sphi 0, %s76
      %s96 = sphi 0, %s96
      %s98 = sphi 0, %s96
      %s99 = sphi 0, %s98
      %s113 = sphi 0, %s99
      %s119 = sphi 0, %s121
      %s122 = sphi 0, %s119
      %s123 = sphi 0, %s122
      %s139 = sphi 0, %s123
      %s143 = sphi 0, %s143
      %s145 = sphi 0, %s143
      %s146 = sphi 0, %s145
      %s160 = sphi 0, %s146
      %s164 = sphi 0, %s164
      %s166 = sphi 0, %s164
      %s167 = sphi 0, %s166
      %s181 = sphi 0, %s167
      %s187 = sphi 0, %s189
      %s190 = sphi 0, %s187
      %s191 = sphi 0, %s190
      %s207 = sphi 0, %s191
      %s213 = sphi 0, %s215
      %s216 = sphi 0, %s213
      %s217 = sphi 0, %s216
      %s233 = sphi 0, %s217
    $region4: #{tpu_custom_call.1} parent=1 // loop_header_branch
      %25 = sbr.rel (%p23) target = $region8
    $region5: #{tpu_custom_call.1} parent=1 // loop_body
      %s27 = ssub.s32 %s22, 1
      %s28 = ssub.s32 %s22, 2
      %s35 = sadd.s32 1, %s30
      %p36 = scmp.ge.s32.totalorder %s35, 2
      %s37 = scalar_select %p36, 0, %s35
      %s38 = sadd.s32 1, %s29
      %s39 = scalar_select %p36, %s38, %s29
      %p40 = scmp.ge.s32.totalorder %s39, 1
      %s41 = scalar_select %p40, 0, %s39
      %s42 = ssub.s32 %s29, %s41
      %s43 = ssub.s32 %s30, %s37
      %s44 = sor.u32 %s42, %s43
      %p45 = scmp.eq.s32.totalorder %s44, 0
      %s47 = sadd.s32 %s46, 1
      %s48 = scalar_select %p45, %s46, %s47
      %p51 = pneg %p45
      %p52 = scmp.eq.s32.totalorder %s22, 1
      %p53 = por %p51, %p52
      %p54 = scmp.ne.s32.totalorder %s46, %s49
      %p55 = scmp.eq.s32.totalorder %s22, 0
      %p56 = por %p54, %p55
      %p57 = scmp.ne.s32.totalorder %s46, %s49
      %p58 = scmp.eq.s32.totalorder %s27, 1
      %p59 = por %p57, %p58
      %p60 = scmp.ne.s32.totalorder %s49, %s50
      %p61 = scmp.eq.s32.totalorder %s27, 0
      %p62 = por %p60, %p61
      %p63 = scmp.ne.s32.totalorder %s49, %s50
      %p64 = scmp.eq.s32.totalorder %s28, 1
      %p65 = por %p63, %p64
      %p67 = scmp.ne.s32.totalorder %s50, %s66
      %p68 = scmp.eq.s32.totalorder %s28, 0
      %p69 = por %p67, %p68
      %s70 = ssub.s32 %s30, %s37
      %p71 = scmp.eq.s32.totalorder %s70, 0
      %s73 = sadd.s32 %s72, 1
      %s74 = scalar_select %p71, %s72, %s73
      %p77 = pneg %p71
      %p78 = scmp.eq.s32.totalorder %s22, 1
      %p79 = por %p77, %p78
      %p80 = scmp.ne.s32.totalorder %s72, %s75
      %p81 = scmp.eq.s32.totalorder %s22, 0
      %p82 = por %p80, %p81
      %p83 = scmp.ne.s32.totalorder %s72, %s75
      %p84 = scmp.eq.s32.totalorder %s27, 1
      %p85 = por %p83, %p84
      %p86 = scmp.ne.s32.totalorder %s75, %s76
      %p87 = scmp.eq.s32.totalorder %s27, 0
      %p88 = por %p86, %p87
      %p89 = scmp.ne.s32.totalorder %s75, %s76
      %p90 = scmp.eq.s32.totalorder %s28, 1
      %p91 = por %p89, %p90
      %p93 = scmp.ne.s32.totalorder %s76, %s92
      %p94 = scmp.eq.s32.totalorder %s28, 0
      %p95 = por %p93, %p94
      %s97 = sadd.s32 %s96, 1
      %p100 = scmp.eq.s32.totalorder %s22, 1
      %p101 = scmp.ne.s32.totalorder %s96, %s98
      %p102 = scmp.eq.s32.totalorder %s22, 0
      %p103 = por %p101, %p102
      %p104 = scmp.ne.s32.totalorder %s96, %s98
      %p105 = scmp.eq.s32.totalorder %s27, 1
      %p106 = por %p104, %p105
      %p107 = scmp.ne.s32.totalorder %s98, %s99
      %p108 = scmp.eq.s32.totalorder %s27, 0
      %p109 = por %p107, %p108
      %p110 = scmp.ne.s32.totalorder %s98, %s99
      %p111 = scmp.eq.s32.totalorder %s28, 1
      %p112 = por %p110, %p111
      %p114 = scmp.ne.s32.totalorder %s99, %s113
      %p115 = scmp.eq.s32.totalorder %s28, 0
      %p116 = por %p114, %p115
      %s117 = ssub.s32 %s29, %s41
      %p118 = scmp.eq.s32.totalorder %s117, 0
      %s120 = sadd.s32 %s119, 1
      %s121 = scalar_select %p118, %s119, %s120
      %p124 = pneg %p118
      %p125 = scmp.eq.s32.totalorder %s22, 1
      %p126 = por %p124, %p125
      %p127 = scmp.ne.s32.totalorder %s119, %s122
      %p128 = scmp.eq.s32.totalorder %s22, 0
      %p129 = por %p127, %p128
      %p130 = scmp.ne.s32.totalorder %s119, %s122
      %p131 = scmp.eq.s32.totalorder %s27, 1
      %p132 = por %p130, %p131
      %p133 = scmp.ne.s32.totalorder %s122, %s123
      %p134 = scmp.eq.s32.totalorder %s27, 0
      %p135 = por %p133, %p134
      %p136 = scmp.ne.s32.totalorder %s122, %s123
      %p137 = scmp.eq.s32.totalorder %s28, 1
      %p138 = por %p136, %p137
      %p140 = scmp.ne.s32.totalorder %s123, %s139
      %p141 = scmp.eq.s32.totalorder %s28, 0
      %p142 = por %p140, %p141
      %s144 = sadd.s32 %s143, 1
      %p147 = scmp.eq.s32.totalorder %s22, 1
      %p148 = scmp.ne.s32.totalorder %s143, %s145
      %p149 = scmp.eq.s32.totalorder %s22, 0
      %p150 = por %p148, %p149
      %p151 = scmp.ne.s32.totalorder %s143, %s145
      %p152 = scmp.eq.s32.totalorder %s27, 1
      %p153 = por %p151, %p152
      %p154 = scmp.ne.s32.totalorder %s145, %s146
      %p155 = scmp.eq.s32.totalorder %s27, 0
      %p156 = por %p154, %p155
      %p157 = scmp.ne.s32.totalorder %s145, %s146
      %p158 = scmp.eq.s32.totalorder %s28, 1
      %p159 = por %p157, %p158
      %p161 = scmp.ne.s32.totalorder %s146, %s160
      %p162 = scmp.eq.s32.totalorder %s28, 0
      %p163 = por %p161, %p162
      %s165 = sadd.s32 %s164, 1
      %p168 = scmp.eq.s32.totalorder %s22, 1
      %p169 = scmp.ne.s32.totalorder %s164, %s166
      %p170 = scmp.eq.s32.totalorder %s22, 0
      %p171 = por %p169, %p170
      %p172 = scmp.ne.s32.totalorder %s164, %s166
      %p173 = scmp.eq.s32.totalorder %s27, 1
      %p174 = por %p172, %p173
      %p175 = scmp.ne.s32.totalorder %s166, %s167
      %p176 = scmp.eq.s32.totalorder %s27, 0
      %p177 = por %p175, %p176
      %p178 = scmp.ne.s32.totalorder %s166, %s167
      %p179 = scmp.eq.s32.totalorder %s28, 1
      %p180 = por %p178, %p179
      %p182 = scmp.ne.s32.totalorder %s167, %s181
      %p183 = scmp.eq.s32.totalorder %s28, 0
      %p184 = por %p182, %p183
      %s185 = ssub.s32 %s29, %s41
      %p186 = scmp.eq.s32.totalorder %s185, 0
      %s188 = sadd.s32 %s187, 1
      %s189 = scalar_select %p186, %s187, %s188
      %p192 = pneg %p186
      %p193 = scmp.eq.s32.totalorder %s22, 1
      %p194 = por %p192, %p193
      %p195 = scmp.ne.s32.totalorder %s187, %s190
      %p196 = scmp.eq.s32.totalorder %s22, 0
      %p197 = por %p195, %p196
      %p198 = scmp.ne.s32.totalorder %s187, %s190
      %p199 = scmp.eq.s32.totalorder %s27, 1
      %p200 = por %p198, %p199
      %p201 = scmp.ne.s32.totalorder %s190, %s191
      %p202 = scmp.eq.s32.totalorder %s27, 0
      %p203 = por %p201, %p202
      %p204 = scmp.ne.s32.totalorder %s190, %s191
      %p205 = scmp.eq.s32.totalorder %s28, 1
      %p206 = por %p204, %p205
      %p208 = scmp.ne.s32.totalorder %s191, %s207
      %p209 = scmp.eq.s32.totalorder %s28, 0
      %p210 = por %p208, %p209
      %s211 = ssub.s32 %s29, %s41
      %p212 = scmp.eq.s32.totalorder %s211, 0
      %s214 = sadd.s32 %s213, 1
      %s215 = scalar_select %p212, %s213, %s214
      %p218 = pneg %p212
      %p219 = scmp.eq.s32.totalorder %s22, 1
      %p220 = por %p218, %p219
      %p221 = scmp.ne.s32.totalorder %s213, %s216
      %p222 = scmp.eq.s32.totalorder %s22, 0
      %p223 = por %p221, %p222
      %p224 = scmp.ne.s32.totalorder %s213, %s216
      %p225 = scmp.eq.s32.totalorder %s27, 1
      %p226 = por %p224, %p225
      %p227 = scmp.ne.s32.totalorder %s216, %s217
      %p228 = scmp.eq.s32.totalorder %s27, 0
      %p229 = por %p227, %p228
      %p230 = scmp.ne.s32.totalorder %s216, %s217
      %p231 = scmp.eq.s32.totalorder %s28, 1
      %p232 = por %p230, %p231
      %p234 = scmp.ne.s32.totalorder %s217, %s233
      %p235 = scmp.eq.s32.totalorder %s28, 0
      %p236 = por %p234, %p235
      %p237 = scmp.le.s32.totalorder 1, %s22
      %p238 = scmp.lt.s32.totalorder %s22, 3
      %p239 = pnand %p237, %p238
      %p240 = pneg %p239
      // Predicated region
      $region9: #{tpu_custom_call.1} parent=5 // pred_check
        _
      $region10: #{tpu_custom_call.1} parent=5 // pred_check_branch
        %242 = sbr.rel (%p239) target = $region12
      $region11: #{tpu_custom_call.1} parent=5 // pred_region
        %s243 = ssub.s32 %s22, 1
        // Predicated region
        $region13: #{tpu_custom_call.1} parent=11 // pred_check
          %p244 = pneg %p109
        $region14: #{tpu_custom_call.1} parent=11 // pred_check_branch
          %246 = sbr.rel (%p244) target = $region16
        $region15: #{tpu_custom_call.1} parent=11 // pred_region
          _
        $region16: #{tpu_custom_call.1} parent=11 // pred_fallthru
          _
        // Predicated region
        $region17: #{tpu_custom_call.1} parent=11 // pred_check
          %p247 = pneg %p135
        $region18: #{tpu_custom_call.1} parent=11 // pred_check_branch
          %249 = sbr.rel (%p247) target = $region20
        $region19: #{tpu_custom_call.1} parent=11 // pred_region
          %p250 = scmp.lt.s32.totalorder %s31, 0
          %s251 = scalar_select %p250, %s31, 0
          %s252 = smul.addr %s251, 2
          %s253 = scalar_lea.vmem %s3, %s252
        $region20: #{tpu_custom_call.1} parent=11 // pred_fallthru
          _
        // Predicated region
        $region21: #{tpu_custom_call.1} parent=11 // pred_check
          %p254 = pneg %p156
        $region22: #{tpu_custom_call.1} parent=11 // pred_check_branch
          %256 = sbr.rel (%p254) target = $region24
        $region23: #{tpu_custom_call.1} parent=11 // pred_region
          %s258 = ssub.s32 2048, 2048
          %259 = vsyncadd [#allocation7], %s258
          %s260 = sshll.u32 [#allocation8], 4
          %s261 = int_to_ptr.vmem [resolvable:$true] %s260
          %266 = dma.hbm_to_vmem [thread:$0]  %s4, 2048, %s261, [#allocation7], 64, 64, 4
        $region24: #{tpu_custom_call.1} parent=11 // pred_fallthru
          _
        // Predicated region
        $region25: #{tpu_custom_call.1} parent=11 // pred_check
          %p267 = pneg %p177
        $region26: #{tpu_custom_call.1} parent=11 // pred_check_branch
          %269 = sbr.rel (%p267) target = $region28
        $region27: #{tpu_custom_call.1} parent=11 // pred_region
          _
        $region28: #{tpu_custom_call.1} parent=11 // pred_fallthru
          _
      $region12: #{tpu_custom_call.1} parent=5 // pred_fallthru
        _
      %p270 = scmp.lt.s32.totalorder %s22, 2
      // Predicated region
      $region29: #{tpu_custom_call.1} parent=5 // pred_check
        %p271 = pneg %p270
      $region30: #{tpu_custom_call.1} parent=5 // pred_check_branch
        %273 = sbr.rel (%p271) target = $region32
      $region31: #{tpu_custom_call.1} parent=5 // pred_region
        // Predicated region
        $region33: #{tpu_custom_call.1} parent=31 // pred_check
          %p274 = pneg %p56
        $region34: #{tpu_custom_call.1} parent=31 // pred_check_branch
          %276 = sbr.rel (%p274) target = $region36
        $region35: #{tpu_custom_call.1} parent=31 // pred_region
          %s277 = sand.u32 %s46, 1
          %s278 = scalar_lea.sflag [#allocation4], %s277
          %s279 = sand.u32 %s46, 1
          %s280 = smul.addr %s279, 4
          %s281 = scalar_lea.vmem [#allocation3], %s280
          %s282 = smul.u32 4, %s30
          %s284 = ssub.s32 64, 64
          %285 = vsyncadd %s278, %s284
          %s286 = smul.addr %s29, 8
          %s287 = sadd.s32 %s282, %s286
          %s288 = smul.addr %s287, 16
          %s289 = scalar_lea.hbm %s0, %s288
          %s291 = sshll.u32 %s281, 4
          %s292 = int_to_ptr.vmem [resolvable:$true] %s291
          %294 = dma.hbm_to_vmem [thread:$0]  %s289, 64, %s292, %s278
        $region36: #{tpu_custom_call.1} parent=31 // pred_fallthru
          _
        // Predicated region
        $region37: #{tpu_custom_call.1} parent=31 // pred_check
          %p295 = pneg %p82
        $region38: #{tpu_custom_call.1} parent=31 // pred_check_branch
          %297 = sbr.rel (%p295) target = $region40
        $region39: #{tpu_custom_call.1} parent=31 // pred_region
          %s298 = sand.u32 %s22, 1
          %s299 = scalar_lea.sflag [#allocation7], %s298
          %s300 = sand.u32 %s72, 1
          %s301 = smul.addr %s300, 256
          %s302 = scalar_lea.vmem [#allocation6], %s301
          %s303 = smul.u32 64, %s30
          %s305 = ssub.s32 4096, 4096
          %306 = vsyncadd %s299, %s305
          %s307 = smul.addr %s303, 64
          %s308 = scalar_lea.hbm %s1, %s307
          %s309 = sshll.u32 %s302, 4
          %s310 = int_to_ptr.vmem [resolvable:$true] %s309
          %315 = dma.hbm_to_vmem [thread:$0]  %s308, 4096, %s310, %s299, 64, 64, 4
        $region40: #{tpu_custom_call.1} parent=31 // pred_fallthru
          _
      $region32: #{tpu_custom_call.1} parent=5 // pred_fallthru
        _
      %p316 = scmp.le.s32.totalorder 1, %s22
      %p317 = scmp.lt.s32.totalorder %s22, 3
      %p318 = pnand %p316, %p317
      %p319 = pneg %p318
      // Predicated region
      $region41: #{tpu_custom_call.1} parent=5 // pred_check
        _
      $region42: #{tpu_custom_call.1} parent=5 // pred_check_branch
        %321 = sbr.rel (%p318) target = $region44
      $region43: #{tpu_custom_call.1} parent=5 // pred_region
        %s322 = ssub.s32 %s22, 1
        %s323 = sand.u32 %s49, 1
        %s324 = scalar_lea.sflag [#allocation4], %s323
        %s325 = sand.u32 %s49, 1
        %s326 = smul.addr %s325, 4
        %s327 = scalar_lea.vmem [#allocation3], %s326
        // Predicated region
        $region45: #{tpu_custom_call.1} parent=43 // pred_check
          %p328 = pneg %p62
        $region46: #{tpu_custom_call.1} parent=43 // pred_check_branch
          %330 = sbr.rel (%p328) target = $region48
        $region47: #{tpu_custom_call.1} parent=43 // pred_region
          %331 = dma.done %s324, 64
        $region48: #{tpu_custom_call.1} parent=43 // pred_fallthru
          _
        %s332 = sand.u32 %s27, 1
        %s333 = scalar_lea.sflag [#allocation7], %s332
        %s334 = sand.u32 %s75, 1
        %s335 = smul.addr %s334, 256
        %s336 = scalar_lea.vmem [#allocation6], %s335
        // Predicated region
        $region49: #{tpu_custom_call.1} parent=43 // pred_check
          %p337 = pneg %p88
        $region50: #{tpu_custom_call.1} parent=43 // pred_check_branch
          %339 = sbr.rel (%p337) target = $region52
        $region51: #{tpu_custom_call.1} parent=43 // pred_region
          %340 = dma.done %s333, 4096
        $region52: #{tpu_custom_call.1} parent=43 // pred_fallthru
          _
        // Predicated region
        $region53: #{tpu_custom_call.1} parent=43 // pred_check
          %p341 = pneg %p156
        $region54: #{tpu_custom_call.1} parent=43 // pred_check_branch
          %343 = sbr.rel (%p341) target = $region56
        $region55: #{tpu_custom_call.1} parent=43 // pred_region
          %344 = dma.done [#allocation7], 2048
        $region56: #{tpu_custom_call.1} parent=43 // pred_fallthru
          _
        %s345 = sand.u32 %s49, 1
        %s346 = scalar_lea.sflag [#allocation4], %s345
        %s347 = sand.u32 %s49, 1
        %s348 = smul.addr %s347, 4
        %s349 = scalar_lea.vmem [#allocation3], %s348
        %p350 = pneg %p62
        %p351 = pneg %p59
        %s352 = sand.u32 %s27, 1
        %s353 = scalar_lea.sflag [#allocation7], %s352
        %s354 = sand.u32 %s75, 1
        %s355 = smul.addr %s354, 256
        %s356 = scalar_lea.vmem [#allocation6], %s355
        %p357 = pneg %p88
        %p358 = pneg %p85
        %p359 = pneg %p109
        %p360 = pneg %p106
        %p361 = scmp.lt.s32.totalorder %s31, 0
        %s362 = scalar_select %p361, %s31, 0
        %s363 = smul.addr %s362, 2
        %s364 = scalar_lea.vmem %s3, %s363
        %p365 = pneg %p135
        %p366 = pneg %p132
        %p367 = pneg %p156
        %p368 = pneg %p153
        %p369 = pneg %p177
        %p370 = pneg %p174
        %p371 = pneg %p203
        %p372 = pneg %p200
        %p373 = pneg %p229
        %p374 = pneg %p226
        %s375 = smul.u32 4, %s32
        %s376 = smul.u32 64, %s32
        %p377 = scmp.lt.s32.totalorder %s31, 0
        %s378 = scalar_select %p377, %s31, 0
        %s379 = smul.addr %s378, 2
        %s380 = scalar_lea.vmem %s3, %s379
        %p382 = scmp.eq.s32.totalorder %s32, 0
        // Predicated region
        $region57: #{tpu_custom_call.1} parent=43 // pred_check
          %p383 = pneg %p382
        $region58: #{tpu_custom_call.1} parent=43 // pred_check_branch
          %385 = sbr.rel (%p383) target = $region60
        $region59: #{tpu_custom_call.1} parent=43 // pred_region
          %v386 = vld [vmem:[%s2] sm:$0x1]
          %v388 = vlaneseq
          %v389 = vshrl.u32 %v388, 7
          %v390 = vsub.s32 0, %v389
          %v391 = vrot.slane %v386, %v390
          %393 = vst [vmem:[#allocation2] sm:$0x3] %v391
        $region60: #{tpu_custom_call.1} parent=43 // pred_fallthru
          _
        %v394 = vld [vmem:[#allocation2] sm:$0x3]
        %v395 = vld [vmem:[%s327] sm:$0xf]
        %v396 = vld [vmem:[%s336] sm:$0xf]
        %v397 = vld [vmem:[%s336 + $0x4] sm:$0xf]
        %v398 = vld [vmem:[%s336 + $0x8] sm:$0xf]
        %v399 = vld [vmem:[%s336 + $0xc] sm:$0xf]
        %v400 = vld [vmem:[%s336 + $0x10] sm:$0xf]
        %v401 = vld [vmem:[%s336 + $0x14] sm:$0xf]
        %v402 = vld [vmem:[%s336 + $0x18] sm:$0xf]
        %v403 = vld [vmem:[%s336 + $0x1c] sm:$0xf]
        %v404 = vld [vmem:[%s336 + $0x20] sm:$0xf]
        %v405 = vld [vmem:[%s336 + $0x24] sm:$0xf]
        %v406 = vld [vmem:[%s336 + $0x28] sm:$0xf]
        %v407 = vld [vmem:[%s336 + $0x2c] sm:$0xf]
        %v408 = vld [vmem:[%s336 + $0x30] sm:$0xf]
        %v409 = vld [vmem:[%s336 + $0x34] sm:$0xf]
        %v410 = vld [vmem:[%s336 + $0x38] sm:$0xf]
        %v411 = vld [vmem:[%s336 + $0x3c] sm:$0xf]
        %v412 = vld [vmem:[%s336 + $0x40] sm:$0xf]
        %v413 = vld [vmem:[%s336 + $0x44] sm:$0xf]
        %v414 = vld [vmem:[%s336 + $0x48] sm:$0xf]
        %v415 = vld [vmem:[%s336 + $0x4c] sm:$0xf]
        %v416 = vld [vmem:[%s336 + $0x50] sm:$0xf]
        %v417 = vld [vmem:[%s336 + $0x54] sm:$0xf]
        %v418 = vld [vmem:[%s336 + $0x58] sm:$0xf]
        %v419 = vld [vmem:[%s336 + $0x5c] sm:$0xf]
        %v420 = vld [vmem:[%s336 + $0x60] sm:$0xf]
        %v421 = vld [vmem:[%s336 + $0x64] sm:$0xf]
        %v422 = vld [vmem:[%s336 + $0x68] sm:$0xf]
        %v423 = vld [vmem:[%s336 + $0x6c] sm:$0xf]
        %v424 = vld [vmem:[%s336 + $0x70] sm:$0xf]
        %v425 = vld [vmem:[%s336 + $0x74] sm:$0xf]
        %v426 = vld [vmem:[%s336 + $0x78] sm:$0xf]
        %v427 = vld [vmem:[%s336 + $0x7c] sm:$0xf]
        %v428 = vld [vmem:[%s336 + $0x80] sm:$0xf]
        %v429 = vld [vmem:[%s336 + $0x84] sm:$0xf]
        %v430 = vld [vmem:[%s336 + $0x88] sm:$0xf]
        %v431 = vld [vmem:[%s336 + $0x8c] sm:$0xf]
        %v432 = vld [vmem:[%s336 + $0x90] sm:$0xf]
        %v433 = vld [vmem:[%s336 + $0x94] sm:$0xf]
        %v434 = vld [vmem:[%s336 + $0x98] sm:$0xf]
        %v435 = vld [vmem:[%s336 + $0x9c] sm:$0xf]
        %v436 = vld [vmem:[%s336 + $0xa0] sm:$0xf]
        %v437 = vld [vmem:[%s336 + $0xa4] sm:$0xf]
        %v438 = vld [vmem:[%s336 + $0xa8] sm:$0xf]
        %v439 = vld [vmem:[%s336 + $0xac] sm:$0xf]
        %v440 = vld [vmem:[%s336 + $0xb0] sm:$0xf]
        %v441 = vld [vmem:[%s336 + $0xb4] sm:$0xf]
        %v442 = vld [vmem:[%s336 + $0xb8] sm:$0xf]
        %v443 = vld [vmem:[%s336 + $0xbc] sm:$0xf]
        %v444 = vld [vmem:[%s336 + $0xc0] sm:$0xf]
        %v445 = vld [vmem:[%s336 + $0xc4] sm:$0xf]
        %v446 = vld [vmem:[%s336 + $0xc8] sm:$0xf]
        %v447 = vld [vmem:[%s336 + $0xcc] sm:$0xf]
        %v448 = vld [vmem:[%s336 + $0xd0] sm:$0xf]
        %v449 = vld [vmem:[%s336 + $0xd4] sm:$0xf]
        %v450 = vld [vmem:[%s336 + $0xd8] sm:$0xf]
        %v451 = vld [vmem:[%s336 + $0xdc] sm:$0xf]
        %v452 = vld [vmem:[%s336 + $0xe0] sm:$0xf]
        %v453 = vld [vmem:[%s336 + $0xe4] sm:$0xf]
        %v454 = vld [vmem:[%s336 + $0xe8] sm:$0xf]
        %v455 = vld [vmem:[%s336 + $0xec] sm:$0xf]
        %v456 = vld [vmem:[%s336 + $0xf0] sm:$0xf]
        %v457 = vld [vmem:[%s336 + $0xf4] sm:$0xf]
        %v458 = vld [vmem:[%s336 + $0xf8] sm:$0xf]
        %v459 = vld [vmem:[%s336 + $0xfc] sm:$0xf]
        %v462 = vunpack.c.l.s4 1966171168
        %v463 = vunpack.c.0.s8 %v462
        %v464 = vlaneseq
        %v465 = vshrl.u32 %v464, 7
        %v466 = vsub.s32 %v463, %v465
        %v467 = vrot.slane %v395, %v466
        %v468 = vcombine.high %v467, %v467
        %v470 = vunpack.c.l.s4 1966171168
        %v471 = vunpack.c.0.s8 %v470
        %v472 = vlaneseq
        %v473 = vshrl.u32 %v472, 7
        %v474 = vsub.s32 %v471, %v473
        %v475 = vrot.slane %v467, %v474
        %v477 = vunpack.c.l.s4 1966171168
        %v478 = vunpack.c.0.s8 %v477
        %v479 = vlaneseq
        %v480 = vshrl.u32 %v479, 7
        %v481 = vsub.s32 %v478, %v480
        %v482 = vrot.slane %v468, %v481
        %v483 = vcombine.high %v475, %v475
        %v484 = vcombine.high %v482, %v482
        %v553 = vunpack.c.l.b16 %v396
        %v554 = vunpack.c.l.b16 %v397
        %v555 = vunpack.c.l.b16 %v398
        %v556 = vunpack.c.l.b16 %v399
        %v557 = vunpack.c.l.b16 %v400
        %v558 = vunpack.c.l.b16 %v401
        %v559 = vunpack.c.l.b16 %v402
        %v560 = vunpack.c.l.b16 %v403
        %v561 = vunpack.c.l.b16 %v404
        %v562 = vunpack.c.l.b16 %v405
        %v563 = vunpack.c.l.b16 %v406
        %v564 = vunpack.c.l.b16 %v407
        %v565 = vunpack.c.l.b16 %v408
        %v566 = vunpack.c.l.b16 %v409
        %v567 = vunpack.c.l.b16 %v410
        %v568 = vunpack.c.l.b16 %v411
        %v569 = vunpack.c.l.b16 %v412
        %v570 = vunpack.c.l.b16 %v413
        %v571 = vunpack.c.l.b16 %v414
        %v572 = vunpack.c.l.b16 %v415
        %v573 = vunpack.c.l.b16 %v416
        %v574 = vunpack.c.l.b16 %v417
        %v575 = vunpack.c.l.b16 %v418
        %v576 = vunpack.c.l.b16 %v419
        %v577 = vunpack.c.l.b16 %v420
        %v578 = vunpack.c.l.b16 %v421
        %v579 = vunpack.c.l.b16 %v422
        %v580 = vunpack.c.l.b16 %v423
        %v581 = vunpack.c.l.b16 %v424
        %v582 = vunpack.c.l.b16 %v425
        %v583 = vunpack.c.l.b16 %v426
        %v584 = vunpack.c.l.b16 %v427
        %v585 = vunpack.c.l.b16 %v428
        %v586 = vunpack.c.l.b16 %v429
        %v587 = vunpack.c.l.b16 %v430
        %v588 = vunpack.c.l.b16 %v431
        %v589 = vunpack.c.l.b16 %v432
        %v590 = vunpack.c.l.b16 %v433
        %v591 = vunpack.c.l.b16 %v434
        %v592 = vunpack.c.l.b16 %v435
        %v593 = vunpack.c.l.b16 %v436
        %v594 = vunpack.c.l.b16 %v437
        %v595 = vunpack.c.l.b16 %v438
        %v596 = vunpack.c.l.b16 %v439
        %v597 = vunpack.c.l.b16 %v440
        %v598 = vunpack.c.l.b16 %v441
        %v599 = vunpack.c.l.b16 %v442
        %v600 = vunpack.c.l.b16 %v443
        %v601 = vunpack.c.l.b16 %v444
        %v602 = vunpack.c.l.b16 %v445
        %v603 = vunpack.c.l.b16 %v446
        %v604 = vunpack.c.l.b16 %v447
        %v605 = vunpack.c.l.b16 %v448
        %v606 = vunpack.c.l.b16 %v449
        %v607 = vunpack.c.l.b16 %v450
        %v608 = vunpack.c.l.b16 %v451
        %v609 = vunpack.c.l.b16 %v452
        %v610 = vunpack.c.l.b16 %v453
        %v611 = vunpack.c.l.b16 %v454
        %v612 = vunpack.c.l.b16 %v455
        %v613 = vunpack.c.l.b16 %v456
        %v614 = vunpack.c.l.b16 %v457
        %v615 = vunpack.c.l.b16 %v458
        %v616 = vunpack.c.l.b16 %v459
        %v617 = vpack.c.b16 %v554, %v553
        %v618 = vpack.c.b16 %v556, %v555
        %v619 = vpack.c.b16 %v558, %v557
        %v620 = vpack.c.b16 %v560, %v559
        %v621 = vpack.c.b16 %v562, %v561
        %v622 = vpack.c.b16 %v564, %v563
        %v623 = vpack.c.b16 %v566, %v565
        %v624 = vpack.c.b16 %v568, %v567
        %v625 = vpack.c.b16 %v570, %v569
        %v626 = vpack.c.b16 %v572, %v571
        %v627 = vpack.c.b16 %v574, %v573
        %v628 = vpack.c.b16 %v576, %v575
        %v629 = vpack.c.b16 %v578, %v577
        %v630 = vpack.c.b16 %v580, %v579
        %v631 = vpack.c.b16 %v582, %v581
        %v632 = vpack.c.b16 %v584, %v583
        %v633 = vpack.c.b16 %v586, %v585
        %v634 = vpack.c.b16 %v588, %v587
        %v635 = vpack.c.b16 %v590, %v589
        %v636 = vpack.c.b16 %v592, %v591
        %v637 = vpack.c.b16 %v594, %v593
        %v638 = vpack.c.b16 %v596, %v595
        %v639 = vpack.c.b16 %v598, %v597
        %v640 = vpack.c.b16 %v600, %v599
        %v641 = vpack.c.b16 %v602, %v601
        %v642 = vpack.c.b16 %v604, %v603
        %v643 = vpack.c.b16 %v606, %v605
        %v644 = vpack.c.b16 %v608, %v607
        %v645 = vpack.c.b16 %v610, %v609
        %v646 = vpack.c.b16 %v612, %v611
        %v647 = vpack.c.b16 %v614, %v613
        %v648 = vpack.c.b16 %v616, %v615
        %681 = vmatprep.subr.bf16.mxu0 0
        %682 = vmatpush1.bf16.msra.mxu0 %v617
        %683 = vmatprep.subr.bf16.mxu0 0
        %684 = vmatpush1.bf16.msra.mxu0 %v618
        %685 = vmatprep.subr.bf16.mxu0 0
        %686 = vmatpush1.bf16.msra.mxu0 %v619
        %687 = vmatprep.subr.bf16.mxu0 0
        %688 = vmatpush1.bf16.msra.mxu0 %v620
        %689 = vmatprep.subr.bf16.mxu0 0
        %690 = vmatpush1.bf16.msra.mxu0 %v621
        %691 = vmatprep.subr.bf16.mxu0 0
        %692 = vmatpush1.bf16.msra.mxu0 %v622
        %693 = vmatprep.subr.bf16.mxu0 0
        %694 = vmatpush1.bf16.msra.mxu0 %v623
        %695 = vmatprep.subr.bf16.mxu0 0
        %696 = vmatpush1.bf16.msra.mxu0 %v624
        %697 = vmatprep.subr.bf16.mxu0 0
        %698 = vmatpush1.bf16.msra.mxu0 %v625
        %699 = vmatprep.subr.bf16.mxu0 0
        %700 = vmatpush1.bf16.msra.mxu0 %v626
        %701 = vmatprep.subr.bf16.mxu0 0
        %702 = vmatpush1.bf16.msra.mxu0 %v627
        %703 = vmatprep.subr.bf16.mxu0 0
        %704 = vmatpush1.bf16.msra.mxu0 %v628
        %705 = vmatprep.subr.bf16.mxu0 0
        %706 = vmatpush1.bf16.msra.mxu0 %v629
        %707 = vmatprep.subr.bf16.mxu0 0
        %708 = vmatpush1.bf16.msra.mxu0 %v630
        %709 = vmatprep.subr.bf16.mxu0 0
        %710 = vmatpush1.bf16.msra.mxu0 %v631
        %711 = vmatprep.subr.bf16.mxu0 0
        %712 = vmatpush1.bf16.msra.mxu0 %v632
        %713 = vmatprep.mubr.bf16.mxu0 %v482
        %714 = vmatmul.mubr.bf16.gmra.mrb[0].mxu0 %v475
        %v715 = vpop.f32.mrb[0].mxu0
        %v716 = vadd.f32 0.0, %v715
        %v717 = vpop.f32.mrb[0].mxu0
        %v718 = vpop.f32.mrb[0].mxu0
        %v719 = vpop.f32.mrb[0].mxu0
        %720 = vdwg.mxu0
        %721 = vmatprep.subr.bf16.mxu0 0
        %722 = vmatpush1.bf16.msra.mxu0 %v633
        %723 = vmatprep.subr.bf16.mxu0 0
        %724 = vmatpush1.bf16.msra.mxu0 %v634
        %725 = vmatprep.subr.bf16.mxu0 0
        %726 = vmatpush1.bf16.msra.mxu0 %v635
        %727 = vmatprep.subr.bf16.mxu0 0
        %728 = vmatpush1.bf16.msra.mxu0 %v636
        %729 = vmatprep.subr.bf16.mxu0 0
        %730 = vmatpush1.bf16.msra.mxu0 %v637
        %731 = vmatprep.subr.bf16.mxu0 0
        %732 = vmatpush1.bf16.msra.mxu0 %v638
        %733 = vmatprep.subr.bf16.mxu0 0
        %734 = vmatpush1.bf16.msra.mxu0 %v639
        %735 = vmatprep.subr.bf16.mxu0 0
        %736 = vmatpush1.bf16.msra.mxu0 %v640
        %737 = vmatprep.subr.bf16.mxu0 0
        %738 = vmatpush1.bf16.msra.mxu0 %v641
        %739 = vmatprep.subr.bf16.mxu0 0
        %740 = vmatpush1.bf16.msra.mxu0 %v642
        %741 = vmatprep.subr.bf16.mxu0 0
        %742 = vmatpush1.bf16.msra.mxu0 %v643
        %743 = vmatprep.subr.bf16.mxu0 0
        %744 = vmatpush1.bf16.msra.mxu0 %v644
        %745 = vmatprep.subr.bf16.mxu0 0
        %746 = vmatpush1.bf16.msra.mxu0 %v645
        %747 = vmatprep.subr.bf16.mxu0 0
        %748 = vmatpush1.bf16.msra.mxu0 %v646
        %749 = vmatprep.subr.bf16.mxu0 0
        %750 = vmatpush1.bf16.msra.mxu0 %v647
        %751 = vmatprep.subr.bf16.mxu0 0
        %752 = vmatpush1.bf16.msra.mxu0 %v648
        %753 = vmatprep.mubr.bf16.mxu0 %v484
        %754 = vmatmul.mubr.bf16.gmra.mrb[0].mxu0 %v483
        %v755 = vpop.f32.mrb[0].mxu0
        %v756 = vadd.f32 %v716, %v755
        %v757 = vpop.f32.mrb[0].mxu0
        %v758 = vpop.f32.mrb[0].mxu0
        %v759 = vpop.f32.mrb[0].mxu0
        %760 = vdwg.mxu0
        %v761 = vadd.f32 %v394, %v756
        %762 = vst [vmem:[#allocation2] sm:$0x3] %v761
        %p763 = scmp.eq.s32.totalorder %s32, 1
        // Predicated region
        $region61: #{tpu_custom_call.1} parent=43 // pred_check
          %p764 = pneg %p763
        $region62: #{tpu_custom_call.1} parent=43 // pred_check_branch
          %766 = sbr.rel (%p764) target = $region64
        $region63: #{tpu_custom_call.1} parent=43 // pred_region
          %v767 = vld [vmem:[%s380] sm:$0x3]
          %v768 = vld [vmem:[#allocation8] sm:$0xf]
          %v769 = vld [vmem:[#allocation8 + $0x4] sm:$0xf]
          %v770 = vld [vmem:[#allocation8 + $0x8] sm:$0xf]
          %v771 = vld [vmem:[#allocation8 + $0xc] sm:$0xf]
          %v772 = vld [vmem:[#allocation8 + $0x10] sm:$0xf]
          %v773 = vld [vmem:[#allocation8 + $0x14] sm:$0xf]
          %v774 = vld [vmem:[#allocation8 + $0x18] sm:$0xf]
          %v775 = vld [vmem:[#allocation8 + $0x1c] sm:$0xf]
          %v776 = vld [vmem:[#allocation8 + $0x20] sm:$0xf]
          %v777 = vld [vmem:[#allocation8 + $0x24] sm:$0xf]
          %v778 = vld [vmem:[#allocation8 + $0x28] sm:$0xf]
          %v779 = vld [vmem:[#allocation8 + $0x2c] sm:$0xf]
          %v780 = vld [vmem:[#allocation8 + $0x30] sm:$0xf]
          %v781 = vld [vmem:[#allocation8 + $0x34] sm:$0xf]
          %v782 = vld [vmem:[#allocation8 + $0x38] sm:$0xf]
          %v783 = vld [vmem:[#allocation8 + $0x3c] sm:$0xf]
          %v784 = vld [vmem:[#allocation8 + $0x40] sm:$0xf]
          %v785 = vld [vmem:[#allocation8 + $0x44] sm:$0xf]
          %v786 = vld [vmem:[#allocation8 + $0x48] sm:$0xf]
          %v787 = vld [vmem:[#allocation8 + $0x4c] sm:$0xf]
          %v788 = vld [vmem:[#allocation8 + $0x50] sm:$0xf]
          %v789 = vld [vmem:[#allocation8 + $0x54] sm:$0xf]
          %v790 = vld [vmem:[#allocation8 + $0x58] sm:$0xf]
          %v791 = vld [vmem:[#allocation8 + $0x5c] sm:$0xf]
          %v792 = vld [vmem:[#allocation8 + $0x60] sm:$0xf]
          %v793 = vld [vmem:[#allocation8 + $0x64] sm:$0xf]
          %v794 = vld [vmem:[#allocation8 + $0x68] sm:$0xf]
          %v795 = vld [vmem:[#allocation8 + $0x6c] sm:$0xf]
          %v796 = vld [vmem:[#allocation8 + $0x70] sm:$0xf]
          %v797 = vld [vmem:[#allocation8 + $0x74] sm:$0xf]
          %v798 = vld [vmem:[#allocation8 + $0x78] sm:$0xf]
          %v799 = vld [vmem:[#allocation8 + $0x7c] sm:$0xf]
          %v800 = vld [vmem:[%s5] sm:$0x1]
          %v802 = vlaneseq
          %v803 = vshrl.u32 %v802, 7
          %v804 = vsub.s32 0, %v803
          %v805 = vrot.slane %v800, %v804
          %v809 = vunpack.c.l.s4 1966171168
          %v810 = vunpack.c.0.s8 %v809
          %v811 = vlaneseq
          %v812 = vshrl.u32 %v811, 7
          %v813 = vsub.s32 %v810, %v812
          %v814 = vrot.slane %v767, %v813
          %v815 = vcombine.high %v814, %v814
          %v817 = vunpack.c.l.s4 1966171168
          %v818 = vunpack.c.0.s8 %v817
          %v819 = vlaneseq
          %v820 = vshrl.u32 %v819, 7
          %v821 = vsub.s32 %v818, %v820
          %v822 = vrot.slane %v814, %v821
          %v824 = vunpack.c.l.s4 1966171168
          %v825 = vunpack.c.0.s8 %v824
          %v826 = vlaneseq
          %v827 = vshrl.u32 %v826, 7
          %v828 = vsub.s32 %v825, %v827
          %v829 = vrot.slane %v815, %v828
          %v864 = vunpack.c.l.b16 %v768
          %v865 = vunpack.c.l.b16 %v769
          %v866 = vunpack.c.l.b16 %v770
          %v867 = vunpack.c.l.b16 %v771
          %v868 = vunpack.c.l.b16 %v772
          %v869 = vunpack.c.l.b16 %v773
          %v870 = vunpack.c.l.b16 %v774
          %v871 = vunpack.c.l.b16 %v775
          %v872 = vunpack.c.l.b16 %v776
          %v873 = vunpack.c.l.b16 %v777
          %v874 = vunpack.c.l.b16 %v778
          %v875 = vunpack.c.l.b16 %v779
          %v876 = vunpack.c.l.b16 %v780
          %v877 = vunpack.c.l.b16 %v781
          %v878 = vunpack.c.l.b16 %v782
          %v879 = vunpack.c.l.b16 %v783
          %v880 = vunpack.c.l.b16 %v784
          %v881 = vunpack.c.l.b16 %v785
          %v882 = vunpack.c.l.b16 %v786
          %v883 = vunpack.c.l.b16 %v787
          %v884 = vunpack.c.l.b16 %v788
          %v885 = vunpack.c.l.b16 %v789
          %v886 = vunpack.c.l.b16 %v790
          %v887 = vunpack.c.l.b16 %v791
          %v888 = vunpack.c.l.b16 %v792
          %v889 = vunpack.c.l.b16 %v793
          %v890 = vunpack.c.l.b16 %v794
          %v891 = vunpack.c.l.b16 %v795
          %v892 = vunpack.c.l.b16 %v796
          %v893 = vunpack.c.l.b16 %v797
          %v894 = vunpack.c.l.b16 %v798
          %v895 = vunpack.c.l.b16 %v799
          %v896 = vpack.c.b16 %v865, %v864
          %v897 = vpack.c.b16 %v867, %v866
          %v898 = vpack.c.b16 %v869, %v868
          %v899 = vpack.c.b16 %v871, %v870
          %v900 = vpack.c.b16 %v873, %v872
          %v901 = vpack.c.b16 %v875, %v874
          %v902 = vpack.c.b16 %v877, %v876
          %v903 = vpack.c.b16 %v879, %v878
          %v904 = vpack.c.b16 %v881, %v880
          %v905 = vpack.c.b16 %v883, %v882
          %v906 = vpack.c.b16 %v885, %v884
          %v907 = vpack.c.b16 %v887, %v886
          %v908 = vpack.c.b16 %v889, %v888
          %v909 = vpack.c.b16 %v891, %v890
          %v910 = vpack.c.b16 %v893, %v892
          %v911 = vpack.c.b16 %v895, %v894
          %928 = vmatprep.subr.bf16.mxu0 0
          %929 = vmatpush1.bf16.msra.mxu0 %v896
          %930 = vmatprep.subr.bf16.mxu0 0
          %931 = vmatpush1.bf16.msra.mxu0 %v897
          %932 = vmatprep.subr.bf16.mxu0 0
          %933 = vmatpush1.bf16.msra.mxu0 %v898
          %934 = vmatprep.subr.bf16.mxu0 0
          %935 = vmatpush1.bf16.msra.mxu0 %v899
          %936 = vmatprep.subr.bf16.mxu0 0
          %937 = vmatpush1.bf16.msra.mxu0 %v900
          %938 = vmatprep.subr.bf16.mxu0 0
          %939 = vmatpush1.bf16.msra.mxu0 %v901
          %940 = vmatprep.subr.bf16.mxu0 0
          %941 = vmatpush1.bf16.msra.mxu0 %v902
          %942 = vmatprep.subr.bf16.mxu0 0
          %943 = vmatpush1.bf16.msra.mxu0 %v903
          %944 = vmatprep.subr.bf16.mxu0 0
          %945 = vmatpush1.bf16.msra.mxu0 %v904
          %946 = vmatprep.subr.bf16.mxu0 0
          %947 = vmatpush1.bf16.msra.mxu0 %v905
          %948 = vmatprep.subr.bf16.mxu0 0
          %949 = vmatpush1.bf16.msra.mxu0 %v906
          %950 = vmatprep.subr.bf16.mxu0 0
          %951 = vmatpush1.bf16.msra.mxu0 %v907
          %952 = vmatprep.subr.bf16.mxu0 0
          %953 = vmatpush1.bf16.msra.mxu0 %v908
          %954 = vmatprep.subr.bf16.mxu0 0
          %955 = vmatpush1.bf16.msra.mxu0 %v909
          %956 = vmatprep.subr.bf16.mxu0 0
          %957 = vmatpush1.bf16.msra.mxu0 %v910
          %958 = vmatprep.subr.bf16.mxu0 0
          %959 = vmatpush1.bf16.msra.mxu0 %v911
          %960 = vmatprep.mubr.bf16.mxu0 %v829
          %961 = vmatmul.mubr.bf16.gmra.mrb[0].mxu0 %v822
          %v962 = vpop.f32.mrb[0].mxu0
          %v963 = vadd.f32 %v805, %v962
          %v964 = vpop.f32.mrb[0].mxu0
          %v965 = vpop.f32.mrb[0].mxu0
          %v966 = vpop.f32.mrb[0].mxu0
          %967 = vdwg.mxu0
          %v968 = vmul.f32 %v963, %v963
          %vm969 = vcmask 1041408
          %v970 = vsel %vm969, %v968, 0.0
          %971 = vadd.xlane.f32.xlu0 %v970
          %v972 = vpop.xlane.xlu0 %971
          %v973 = vmax.f32 %v972, 1e-24
          %v974 = vrsqrt.pop %v973
          %v975 = vmul.f32 %v963, %v974
          %976 = vst [vmem:[#allocation10] sm:$0x3] %v975
          %v977 = vld [vmem:[#allocation2] sm:$0x3]
          %v978 = vmul.f32 %v977, %v977
          %v979 = vsel %vm969, %v978, 0.0
          %980 = vadd.xlane.f32.xlu0 %v979
          %v981 = vpop.xlane.xlu0 %980
          %v982 = vmax.f32 %v981, 1e-24
          %v983 = vrsqrt.pop %v982
          %v984 = vmul.f32 %v977, %v983
          %985 = vst [vmem:[#allocation9] sm:$0x3] %v984
        $region64: #{tpu_custom_call.1} parent=43 // pred_fallthru
          _
        // Predicated region
        $region65: #{tpu_custom_call.1} parent=43 // pred_check
          %p986 = pneg %p200
        $region66: #{tpu_custom_call.1} parent=43 // pred_check_branch
          %988 = sbr.rel (%p986) target = $region68
        $region67: #{tpu_custom_call.1} parent=43 // pred_region
          %s990 = ssub.s32 32, 32
          %991 = vsyncadd [#allocation5], %s990
          %s992 = smul.addr %s31, 32
          %s993 = scalar_lea.hbm %s6, %s992
          %s995 = sshll.u32 [#allocation9], 4
          %s996 = int_to_ptr.vmem [resolvable:$true] %s995
          %998 = dma.vmem_to_hbm [thread:$0]  %s996, 32, %s993, [#allocation5]
        $region68: #{tpu_custom_call.1} parent=43 // pred_fallthru
          _
        // Predicated region
        $region69: #{tpu_custom_call.1} parent=43 // pred_check
          %p999 = pneg %p226
        $region70: #{tpu_custom_call.1} parent=43 // pred_check_branch
          %1001 = sbr.rel (%p999) target = $region72
        $region71: #{tpu_custom_call.1} parent=43 // pred_region
          %s1003 = ssub.s32 32, 32
          %1004 = vsyncadd [#allocation11], %s1003
          %s1005 = smul.addr %s31, 32
          %s1006 = scalar_lea.hbm %s7, %s1005
          %s1008 = sshll.u32 [#allocation10], 4
          %s1009 = int_to_ptr.vmem [resolvable:$true] %s1008
          %1011 = dma.vmem_to_hbm [thread:$0]  %s1009, 32, %s1006, [#allocation11]
        $region72: #{tpu_custom_call.1} parent=43 // pred_fallthru
          _
        // Predicated region
        $region73: #{tpu_custom_call.1} parent=43 // pred_check
          %p1012 = pneg %p200
        $region74: #{tpu_custom_call.1} parent=43 // pred_check_branch
          %1014 = sbr.rel (%p1012) target = $region76
        $region75: #{tpu_custom_call.1} parent=43 // pred_region
          %1015 = dma.done [#allocation5], 32
        $region76: #{tpu_custom_call.1} parent=43 // pred_fallthru
          _
        // Predicated region
        $region77: #{tpu_custom_call.1} parent=43 // pred_check
          %p1016 = pneg %p226
        $region78: #{tpu_custom_call.1} parent=43 // pred_check_branch
          %1018 = sbr.rel (%p1016) target = $region80
        $region79: #{tpu_custom_call.1} parent=43 // pred_region
          %1019 = dma.done [#allocation11], 32
        $region80: #{tpu_custom_call.1} parent=43 // pred_fallthru
          _
      $region44: #{tpu_custom_call.1} parent=5 // pred_fallthru
        _
      %p1020 = scmp.le.s32.totalorder 2, %s22
      // Predicated region
      $region81: #{tpu_custom_call.1} parent=5 // pred_check
        %p1021 = pneg %p1020
      $region82: #{tpu_custom_call.1} parent=5 // pred_check_branch
        %1023 = sbr.rel (%p1021) target = $region84
      $region83: #{tpu_custom_call.1} parent=5 // pred_region
        %s1024 = ssub.s32 %s22, 2
      $region84: #{tpu_custom_call.1} parent=5 // pred_fallthru
        _
    $region6: #{tpu_custom_call.1} parent=1 // loop_footer
      %s26 = sadd.s32 1, %s22
    $region7: #{tpu_custom_call.1} parent=1 // loop_footer_branch
      %21 = sbr.rel target = $region3
    $region8: #{tpu_custom_call.1} parent=1 // loop_exit
      _
    %1025 = vsyncpa [#allocation4], 1
    %s1026 = scalar_lea.sflag [#allocation4], 1
    %1027 = vsyncpa %s1026, 1
    %1028 = vsyncpa [#allocation7], 1
    %s1029 = scalar_lea.sflag [#allocation7], 1
    %1030 = vsyncpa %s1029, 1
    %1031 = vsyncpa [#allocation5], 1
    %s1032 = scalar_lea.sflag [#allocation5], 1
    %1033 = vsyncpa %s1032, 1
    %1034 = vsyncpa [#allocation11], 1

</llo_original>
